<compile_context>
chip_gen: v6e
topology: v6e:2x2x1
jax: 0.10.0
libtpu: 0.0.40
codegen_flags: <defaults>
</compile_context>

<pallas_src>
import jax
import jax.numpy as jnp
from jax.experimental import pallas as pl
from jax.experimental.pallas import tpu as pltpu

LANE = 128      # lanes per vreg (fast axis)
SUBLANES = 8    # sublanes per f32 vreg


def _detect_config():
    """Pick block size / split count / VMEM limit for the local TPU generation."""
    try:
        kind = jax.devices()[0].device_kind.lower()
    except Exception:  # pragma: no cover - defensive
        kind = ""
    # Defaults are v5e-safe (6 MiB of double-buffered inputs).
    block_rows, num_splits, vmem_limit = 2048, 1, 32 << 20
    if "v6" in kind:
        # 12 MiB of double-buffered inputs, single TensorCore.
        block_rows, num_splits, vmem_limit = 4096, 1, 48 << 20
    elif "v7" in kind:
        # 24 MiB of double-buffered inputs per TC, 2 TensorCores per chip.
        block_rows, num_splits, vmem_limit = 8192, 2, 48 << 20
    return block_rows, num_splits, vmem_limit


def _ewc_kernel(f_ref, p_ref, o_ref, out_ref, acc_ref):
    k = pl.program_id(1)

    @pl.when(k == 0)
    def _():
        acc_ref[...] = jnp.zeros_like(acc_ref)

    # Hot loop: pure VPU work hidden under the block DMA.
    d = p_ref[...].astype(jnp.float32) - o_ref[...].astype(jnp.float32)
    contrib = f_ref[...].astype(jnp.float32) * d * d
    # Fold the whole block into one (8, LANE) vreg accumulator. The reshape is
    # vreg-tile aligned (rows are a multiple of 8), so this is contiguous
    # VALU adds only -- no XLU, no block-sized VMEM read-modify-write.
    acc_ref[...] += jnp.sum(contrib.reshape(-1, SUBLANES, LANE), axis=0)

    @pl.when(k == pl.num_programs(1) - 1)
    def _():
        out_ref[0] = acc_ref[...]


def _flatten_pad_2d(tree, names, n_pad):
    """Flatten dict of arrays (native dtype) into a zero-padded (rows, 128) buffer."""
    v = jnp.concatenate([jnp.ravel(tree[n]) for n in names])
    v = jnp.pad(v, (0, n_pad - v.shape[0]))
    return v.reshape(n_pad // LANE, LANE)


def _round_up(x, m):
    return ((x + m - 1) // m) * m


def prepare_penalty_state(fishers, optimals):
    """Build the cached (task-boundary-only) side of the EWC penalty.

    fishers / optimals: dicts name -> array (matching shapes).
    Returns an opaque state dict reused by ewc_penalty_pallas every step.
    Padding correctness relies on fisher == 0 in the pad region (guaranteed
    here by jnp.pad), not on params/optimals.
    """
    block_rows, num_splits, vmem_limit = _detect_config()

    names = sorted(fishers.keys())
    n = sum(int(fishers[k].size) for k in names)

    # Shrink the block for tiny parameter counts (keeps rows a multiple of 8
    # so the in-kernel fold reshape stays vreg-tile aligned).
    rows_needed = pl.cdiv(n, LANE)
    rows_per_split_needed = pl.cdiv(rows_needed, num_splits)
    block_rows = min(block_rows, _round_up(rows_per_split_needed, SUBLANES))

    block_elems = num_splits * block_rows * LANE
    n_pad = pl.cdiv(n, block_elems) * block_elems
    blocks_per_split = n_pad // block_elems

    f2 = _flatten_pad_2d(fishers, names, n_pad)
    o2 = _flatten_pad_2d(optimals, names, n_pad)

    return {
        "names": names,
        "n_pad": n_pad,
        "block_rows": block_rows,
        "num_splits": num_splits,
        "blocks_per_split": blocks_per_split,
        "vmem_limit": vmem_limit,
        "f2": f2,
        "o2": o2,
    }


def ewc_penalty_pallas(state, params, ewc_lambda=1000.0):
    """Compute OnlineEWC.forward with a Pallas reduction kernel.

    state: result of prepare_penalty_state (cached across training steps).
    params: dict name -> current parameter array.
    Returns a scalar float32 penalty.
    """
    names = state["names"]
    n_pad = state["n_pad"]
    block_rows = state["block_rows"]
    num_splits = state["num_splits"]
    blocks_per_split = state["blocks_per_split"]
    vmem_limit = state["vmem_limit"]
    f2, o2 = state["f2"], state["o2"]

    # Only the live params are re-flattened per call.
    p2 = _flatten_pad_2d(params, names, n_pad)

    grid = (num_splits, blocks_per_split)

    def in_idx(p, k):
        # Contiguous per-split row range: each split streams a disjoint
        # contiguous half of HBM (good for 2-TC sharding on v7x).
        return (p * blocks_per_split + k, 0)

    blk = pl.BlockSpec((block_rows, LANE), in_idx)

    partials = pl.pallas_call(
        _ewc_kernel,
        out_shape=jax.ShapeDtypeStruct((num_splits, SUBLANES, LANE),
                                       jnp.float32),
        grid_spec=pltpu.PrefetchScalarGridSpec(
            num_scalar_prefetch=0,
            grid=grid,
            in_specs=[blk, blk, blk],
            out_specs=pl.BlockSpec((1, SUBLANES, LANE),
                                   lambda p, k: (p, 0, 0)),
            scratch_shapes=[pltpu.VMEM((SUBLANES, LANE), jnp.float32)],
        ),
        compiler_params=pltpu.CompilerParams(
            dimension_semantics=("parallel", "arbitrary"),
            vmem_limit_bytes=vmem_limit),
    )(f2, p2, o2)

    # Final tiny cross-lane reduction + lambda scale in plain JAX.
    return jnp.float32(ewc_lambda) * jnp.sum(partials)


def update_fisher_and_params(state, new_fisher, model_params, gamma=1.0):
    """Plain-JAX glue mirroring OnlineEWC.update_fisher_and_params."""
    fishers, optimals, task_count = state
    fishers = dict(fishers)
    optimals = dict(optimals)
    for name, param in model_params.items():
        if name in new_fisher:
            if name not in fishers:
                fishers[name] = new_fisher[name]
            else:
                fishers[name] = gamma * fishers[name] + new_fisher[name]
            optimals[name] = param
    return fishers, optimals, task_count + 1


if __name__ == "__main__":
    key = jax.random.PRNGKey(0)

    # Synthetic "model" parameter shapes (conv weights are OIHW-style).
    shapes = {
        "conv1.weight": (4, 4, 3, 3),
        "conv1.bias": (4,),
        "fc.weight": (10, 4 * 16),
        "fc.bias": (10,),
    }

    keys = jax.random.split(key, 3 * len(shapes))
    optimal_params = {}
    fisher_info = {}
    current_params = {}
    for i, (name, shp) in enumerate(sorted(shapes.items())):
        k_opt, k_fish, k_delta = keys[3 * i], keys[3 * i + 1], keys[3 * i + 2]
        opt = jax.random.normal(k_opt, shp, dtype=jnp.float32)
        fish = jax.random.uniform(k_fish, shp, dtype=jnp.float32)  # Fisher >= 0
        cur = opt + 0.05 * jax.random.normal(k_delta, shp, dtype=jnp.float32)
        optimal_params[name] = opt
        fisher_info[name] = fish
        current_params[name] = cur

    # Mirror OnlineEWC state setup (update_fisher_and_params on task 1).
    ewc_state = ({}, {}, 0)
    fishers, optimals, task_count = update_fisher_and_params(
        ewc_state, fisher_info, optimal_params, gamma=1.0)

    # Build the cached (fisher/optimal) side once per task boundary...
    penalty_state = prepare_penalty_state(fishers, optimals)

    # ...then the per-training-step penalty only re-flattens the live params.
    ewc_lambda = 1000.0
    penalty = ewc_penalty_pallas(penalty_state, current_params,
                                 ewc_lambda=ewc_lambda)
    penalty = jax.block_until_ready(penalty)

    # Pure-JAX reference check.
    ref = ewc_lambda * sum(
        jnp.sum(fishers[n] * (current_params[n] - optimals[n]) ** 2)
        for n in fishers)
    assert jnp.allclose(penalty, ref, rtol=1e-5, atol=1e-5), (penalty, ref)

    print("KERNEL_OK")
</pallas_src>

<mosaic_0001>
module attributes {stable_mosaic.version = 11 : i64} {
  func.func @_ewc_kernel(%arg0: i32, %arg1: i32, %arg2: memref<8x128xf32, #tpu.memory_space<vmem>>, %arg3: memref<8x128xf32, #tpu.memory_space<vmem>>, %arg4: memref<8x128xf32, #tpu.memory_space<vmem>>, %arg5: memref<1x8x128xf32, #tpu.memory_space<vmem>>, %arg6: memref<8x128xf32, #tpu.memory_space<vmem>>) attributes {dimension_semantics = [#tpu.dimension_semantics<parallel>, #tpu.dimension_semantics<arbitrary>], iteration_bounds = array<i64: 1, 1>, scalar_prefetch = 0 : i64, scratch_operands = 1 : i64, tpu.core_type = #tpu.core_type<tc>, window_params = [{transform_indices = @transform_0, window_bounds = array<i64: 8, 128>}, {transform_indices = @transform_1, window_bounds = array<i64: 8, 128>}, {transform_indices = @transform_2, window_bounds = array<i64: 8, 128>}, {transform_indices = @transform_3, window_bounds = array<i64: 1, 8, 128>}]} {
    %c0_i32 = arith.constant 0 : i32
    %0 = arith.cmpi eq, %arg1, %c0_i32 : i32
    %1 = arith.extui %0 : i1 to i32
    %c0_i32_0 = arith.constant 0 : i32
    %2 = arith.cmpi ne, %1, %c0_i32_0 : i32
    scf.if %2 {
      %cst_12 = arith.constant 0.000000e+00 : f32
      %17 = vector.broadcast %cst_12 : f32 to vector<8x128xf32>
      %c0_13 = arith.constant 0 : index
      %c0_14 = arith.constant 0 : index
      %18 = vector.load %arg6[%c0_13, %c0_14] : memref<8x128xf32, #tpu.memory_space<vmem>>, vector<8x128xf32>
      tpu.vector_store %arg6[%c0_13, %c0_14], %17 {strides = array<i32>} : memref<8x128xf32, #tpu.memory_space<vmem>>, vector<8x128xf32>,
    } else {
    }
    %c0 = arith.constant 0 : index
    %c0_1 = arith.constant 0 : index
    %3 = vector.load %arg3[%c0, %c0_1] : memref<8x128xf32, #tpu.memory_space<vmem>>, vector<8x128xf32>
    %c0_2 = arith.constant 0 : index
    %c0_3 = arith.constant 0 : index
    %4 = vector.load %arg4[%c0_2, %c0_3] : memref<8x128xf32, #tpu.memory_space<vmem>>, vector<8x128xf32>
    %5 = arith.subf %3, %4 : vector<8x128xf32>
    %c0_4 = arith.constant 0 : index
    %c0_5 = arith.constant 0 : index
    %6 = vector.load %arg2[%c0_4, %c0_5] : memref<8x128xf32, #tpu.memory_space<vmem>>, vector<8x128xf32>
    %7 = arith.mulf %6, %5 : vector<8x128xf32>
    %8 = arith.mulf %7, %5 : vector<8x128xf32>
    %c0_6 = arith.constant 0 : index
    %c0_7 = arith.constant 0 : index
    %9 = vector.load %arg6[%c0_6, %c0_7] : memref<8x128xf32, #tpu.memory_space<vmem>>, vector<8x128xf32>
    %10 = vector.shape_cast %8 : vector<8x128xf32> to vector<1x8x128xf32>
    %cst = arith.constant dense<0.000000e+00> : vector<8x128xf32>
    %11 = vector.multi_reduction <add>, %10, %cst [0] : vector<1x8x128xf32> to vector<8x128xf32>
    %12 = arith.addf %9, %11 : vector<8x128xf32>
    %c0_8 = arith.constant 0 : index
    %c0_9 = arith.constant 0 : index
    %13 = vector.load %arg6[%c0_8, %c0_9] : memref<8x128xf32, #tpu.memory_space<vmem>>, vector<8x128xf32>
    tpu.vector_store %arg6[%c0_8, %c0_9], %12 {strides = array<i32>} : memref<8x128xf32, #tpu.memory_space<vmem>>, vector<8x128xf32>,
    %c0_i32_10 = arith.constant 0 : i32
    %14 = arith.cmpi eq, %arg1, %c0_i32_10 : i32
    %15 = arith.extui %14 : i1 to i32
    %c0_i32_11 = arith.constant 0 : i32
    %16 = arith.cmpi ne, %15, %c0_i32_11 : i32
    scf.if %16 {
      %c0_12 = arith.constant 0 : index
      %c0_13 = arith.constant 0 : index
      %17 = vector.load %arg6[%c0_12, %c0_13] : memref<8x128xf32, #tpu.memory_space<vmem>>, vector<8x128xf32>
      %c0_14 = arith.constant 0 : index
      %c0_15 = arith.constant 0 : index
      %c0_16 = arith.constant 0 : index
      %18 = vector.load %arg5[%c0_14, %c0_15, %c0_16] : memref<1x8x128xf32, #tpu.memory_space<vmem>>, vector<1x8x128xf32>
      %19 = vector.shape_cast %18 : vector<1x8x128xf32> to vector<8x128xf32>
      %20 = vector.shape_cast %17 : vector<8x128xf32> to vector<1x8x128xf32>
      tpu.vector_store %arg5[%c0_14, %c0_15, %c0_16], %20 {strides = array<i32>} : memref<1x8x128xf32, #tpu.memory_space<vmem>>, vector<1x8x128xf32>,
    } else {
    }
    return
  }
  func.func @transform_0(%arg0: i32, %arg1: i32) -> (i32, i32) {
    %c1_i32 = arith.constant 1 : i32
    %0 = arith.muli %arg0, %c1_i32 : i32
    %1 = arith.addi %0, %arg1 : i32
    %c0_i32 = arith.constant 0 : i32
    %c0_i32_0 = arith.constant 0 : i32
    return %1, %c0_i32 : i32, i32
  }
  func.func @transform_1(%arg0: i32, %arg1: i32) -> (i32, i32) {
    %c1_i32 = arith.constant 1 : i32
    %0 = arith.muli %arg0, %c1_i32 : i32
    %1 = arith.addi %0, %arg1 : i32
    %c0_i32 = arith.constant 0 : i32
    %c0_i32_0 = arith.constant 0 : i32
    return %1, %c0_i32 : i32, i32
  }
  func.func @transform_2(%arg0: i32, %arg1: i32) -> (i32, i32) {
    %c1_i32 = arith.constant 1 : i32
    %0 = arith.muli %arg0, %c1_i32 : i32
    %1 = arith.addi %0, %arg1 : i32
    %c0_i32 = arith.constant 0 : i32
    %c0_i32_0 = arith.constant 0 : i32
    return %1, %c0_i32 : i32, i32
  }
  func.func @transform_3(%arg0: i32, %arg1: i32) -> (i32, i32, i32) {
    %c0_i32 = arith.constant 0 : i32
    %c0_i32_0 = arith.constant 0 : i32
    %c0_i32_1 = arith.constant 0 : i32
    return %arg0, %c0_i32, %c0_i32_0 : i32, i32, i32
  }
}

</mosaic_0001>

<llo_original>
// kernel: tpu_custom_call.1
$region0: #{tpu_custom_call.1}
  #allocation0 [shape = 'u32[]', space=smem, size = 0x4, offset = 0x4, fixed_abs, tag = 'smem constant byte address 0x4 - core index']
  #allocation1 [shape = 'u32[144,128]{1,0:T(1,128)}', space=vmem, size = 0x12000, scoped, tag = 'internal scratch']
  #allocation2 [shape = 'f32[8,128]{1,0:T(8,128)}', space=vmem, size = 0x1000, scoped, tag = 'scratch operand']
  %s0 = inlined_call_operand.hbm [shape: f32[8,128], index: 0, kind: input, shape index: {}]
  %s1 = inlined_call_operand.hbm [shape: f32[8,128], index: 1, kind: input, shape index: {}]
  %s2 = inlined_call_operand.hbm [shape: f32[8,128], index: 2, kind: input, shape index: {}]
  %s3 = inlined_call_operand.hbm [shape: f32[1,8,128], index: 3, kind: output, shape index: {}]
  %s4 = sld [smem:[#allocation0]]
  $region42: #{tpu_custom_call.1} parent=0
    _
  %s6 = ssub.s32 1, %s4
  %s7 = scalar_select 0, %s6, %s4
  $region1: #{tpu_custom_call.1} parent=0
    #allocation3 [shape = 'u8[4096]{0}', space=vmem, size = 0x1000, scoped, tag = 'input window, operand 0, single buffered']
    #allocation4 [shape = 's32[1]{0}', space=sflag, size = 0x4, scoped, tag = 'scoped memory for tpu_custom_call.1']
    #allocation5 [shape = 's32[1]{0}', space=sflag, size = 0x4, scoped, tag = 'scoped memory for tpu_custom_call.1']
    #allocation6 [shape = 'u8[4096]{0}', space=vmem, size = 0x1000, scoped, tag = 'input window, operand 1, single buffered']
    #allocation7 [shape = 's32[1]{0}', space=sflag, size = 0x4, scoped, tag = 'scoped memory for tpu_custom_call.1']
    #allocation8 [shape = 'u8[4096]{0}', space=vmem, size = 0x1000, scoped, tag = 'input window, operand 2, single buffered']
    #allocation9 [shape = 'u8[4096]{0}', space=vmem, size = 0x1000, scoped, tag = 'output window, operand 0, single buffered']
    %8 = vsyncpa [#allocation4], 0
    %9 = vsyncpa [#allocation7], 0
    %10 = vsyncpa [#allocation5], 0
    // Predicated region
    $region2: #{tpu_custom_call.1} parent=1 // pred_check
      _
    $region3: #{tpu_custom_call.1} parent=1 // pred_check_branch
      %12 = sbr.rel (0) target = $region5
    $region4: #{tpu_custom_call.1} parent=1 // pred_region
      %s13 = sadd.s32 0, 0
      %s15 = ssub.s32 128, 128
      %16 = vsyncadd [#allocation4], %s15
      %s17 = smul.addr %s13, 128
      %s18 = scalar_lea.hbm %s0, %s17
      %s20 = sshll.u32 [#allocation3], 4
      %s21 = int_to_ptr.vmem [resolvable:$true] %s20
      %23 = dma.hbm_to_vmem [thread:$0]  %s18, 128, %s21, [#allocation4]
    $region5: #{tpu_custom_call.1} parent=1 // pred_fallthru
      _
    // Predicated region
    $region6: #{tpu_custom_call.1} parent=1 // pred_check
      _
    $region7: #{tpu_custom_call.1} parent=1 // pred_check_branch
      %25 = sbr.rel (0) target = $region9
    $region8: #{tpu_custom_call.1} parent=1 // pred_region
      %s26 = sadd.s32 0, 0
      %s28 = ssub.s32 128, 128
      %29 = vsyncadd [#allocation7], %s28
      %s30 = smul.addr %s26, 128
      %s31 = scalar_lea.hbm %s1, %s30
      %s33 = sshll.u32 [#allocation6], 4
      %s34 = int_to_ptr.vmem [resolvable:$true] %s33
      %36 = dma.hbm_to_vmem [thread:$0]  %s31, 128, %s34, [#allocation7]
    $region9: #{tpu_custom_call.1} parent=1 // pred_fallthru
      _
    // Predicated region
    $region10: #{tpu_custom_call.1} parent=1 // pred_check
      _
    $region11: #{tpu_custom_call.1} parent=1 // pred_check_branch
      %38 = sbr.rel (0) target = $region13
    $region12: #{tpu_custom_call.1} parent=1 // pred_region
      %s39 = sadd.s32 0, 0
      %s41 = ssub.s32 128, 128
      %42 = vsyncadd [#allocation7], %s41
      %s43 = smul.addr %s39, 128
      %s44 = scalar_lea.hbm %s2, %s43
      %s46 = sshll.u32 [#allocation8], 4
      %s47 = int_to_ptr.vmem [resolvable:$true] %s46
      %49 = dma.hbm_to_vmem [thread:$0]  %s44, 128, %s47, [#allocation7]
    $region13: #{tpu_custom_call.1} parent=1 // pred_fallthru
      _
    // Predicated region
    $region14: #{tpu_custom_call.1} parent=1 // pred_check
      _
    $region15: #{tpu_custom_call.1} parent=1 // pred_check_branch
      %51 = sbr.rel (0) target = $region17
    $region16: #{tpu_custom_call.1} parent=1 // pred_region
      %52 = dma.done [#allocation4], 128
    $region17: #{tpu_custom_call.1} parent=1 // pred_fallthru
      _
    // Predicated region
    $region18: #{tpu_custom_call.1} parent=1 // pred_check
      _
    $region19: #{tpu_custom_call.1} parent=1 // pred_check_branch
      %54 = sbr.rel (0) target = $region21
    $region20: #{tpu_custom_call.1} parent=1 // pred_region
      %55 = dma.done [#allocation7], 128
    $region21: #{tpu_custom_call.1} parent=1 // pred_fallthru
      _
    // Predicated region
    $region22: #{tpu_custom_call.1} parent=1 // pred_check
      _
    $region23: #{tpu_custom_call.1} parent=1 // pred_check_branch
      %57 = sbr.rel (0) target = $region25
    $region24: #{tpu_custom_call.1} parent=1 // pred_region
      %58 = dma.done [#allocation7], 128
    $region25: #{tpu_custom_call.1} parent=1 // pred_fallthru
      _
    %s59 = sadd.s32 0, 0
    %s60 = sadd.s32 0, 0
    %s61 = sadd.s32 0, 0
    %p62 = scmp.eq.s32.totalorder 0, 0
    // Predicated region
    $region26: #{tpu_custom_call.1} parent=1 // pred_check
      %p63 = pneg %p62
    $region27: #{tpu_custom_call.1} parent=1 // pred_check_branch
      %65 = sbr.rel (%p63) target = $region29
    $region28: #{tpu_custom_call.1} parent=1 // pred_region
      %66 = vst [vmem:[#allocation2] sm:$0xff] 0.0
    $region29: #{tpu_custom_call.1} parent=1 // pred_fallthru
      _
    %v67 = vld [vmem:[#allocation6] sm:$0xff]
    %v68 = vld [vmem:[#allocation8] sm:$0xff]
    %v69 = vsub.f32 %v67, %v68
    %v70 = vld [vmem:[#allocation3] sm:$0xff]
    %v71 = vmul.f32 %v70, %v69
    %v72 = vmul.f32 %v71, %v69
    %v73 = vld [vmem:[#allocation2] sm:$0xff]
    %v74 = vadd.f32 %v72, 0.0
    %v75 = vadd.f32 %v73, %v74
    %76 = vst [vmem:[#allocation2] sm:$0xff] %v75
    // Predicated region
    $region30: #{tpu_custom_call.1} parent=1 // pred_check
      %p77 = pneg %p62
    $region31: #{tpu_custom_call.1} parent=1 // pred_check_branch
      %79 = sbr.rel (%p77) target = $region33
    $region32: #{tpu_custom_call.1} parent=1 // pred_region
      %v80 = vld [vmem:[#allocation2] sm:$0xff]
      %81 = vst [vmem:[#allocation9] sm:$0xff] %v80
    $region33: #{tpu_custom_call.1} parent=1 // pred_fallthru
      _
    // Predicated region
    $region34: #{tpu_custom_call.1} parent=1 // pred_check
      _
    $region35: #{tpu_custom_call.1} parent=1 // pred_check_branch
      %83 = sbr.rel (0) target = $region37
    $region36: #{tpu_custom_call.1} parent=1 // pred_region
      %s85 = ssub.s32 128, 128
      %86 = vsyncadd [#allocation5], %s85
      %s88 = sshll.u32 [#allocation9], 4
      %s89 = int_to_ptr.vmem [resolvable:$true] %s88
      %91 = dma.vmem_to_hbm [thread:$0]  %s89, 128, %s3, [#allocation5]
    $region37: #{tpu_custom_call.1} parent=1 // pred_fallthru
      _
    // Predicated region
    $region38: #{tpu_custom_call.1} parent=1 // pred_check
      _
    $region39: #{tpu_custom_call.1} parent=1 // pred_check_branch
      %93 = sbr.rel (0) target = $region41
    $region40: #{tpu_custom_call.1} parent=1 // pred_region
      %94 = dma.done [#allocation5], 128
    $region41: #{tpu_custom_call.1} parent=1 // pred_fallthru
      _
    %95 = vsyncpa [#allocation4], 1
    %96 = vsyncpa [#allocation7], 1
    %97 = vsyncpa [#allocation5], 1

</llo_original>
